<compile_context>
chip_gen: v6e
topology: v6e:2x2x1
jax: 0.10.0
libtpu: 0.0.40
codegen_flags: <defaults>
</compile_context>

<pallas_src>
import jax
import jax.numpy as jnp
from jax.experimental import pallas as pl
from jax.experimental.pallas import tpu as pltpu

# Small problem sizes consistent with the module defaults (mid_channels = 2 * in_channels).
N = 8            # batch rows
C_IN = 32        # in_channels
C_MID = 2 * C_IN # mid_channels (default)
C_OUT = 32       # out_channels
BN_EPS = 1e-5    # nn.BatchNorm1d default eps


def projector_kernel(x_ref, w1_ref, b1_ref, w2_ref, b2_ref, y_ref):
    """Whole forward pass in VMEM: (Linear+BN folded) -> silu -> (Linear+BN folded)."""
    x = x_ref[...]                                                    # (N, C_IN)
    h = jnp.dot(x, w1_ref[...], preferred_element_type=jnp.float32) + b1_ref[...]
    h = h * jax.nn.sigmoid(h)                                         # nonlinearity: x * sigmoid(x)
    y = jnp.dot(h, w2_ref[...], preferred_element_type=jnp.float32) + b2_ref[...]
    y_ref[...] = y


def _fold_linear_bn(w, b, gamma, beta, mean, var):
    """Fold eval-mode BatchNorm1d into the preceding Linear.

    PyTorch Linear: y = x @ w.T + b   (w stored (out, in))
    BN (eval):      z = (y - mean) / sqrt(var + eps) * gamma + beta
    Folded:         z = x @ (w.T * s) + ((b - mean) * s + beta),  s = gamma / sqrt(var + eps)
    """
    s = gamma / jnp.sqrt(var + BN_EPS)
    w_f = w.T * s[None, :]                 # (in, out), kernel computes x @ w_f
    b_f = (b - mean) * s + beta            # (out,)
    return w_f, b_f.reshape(1, -1)


@jax.jit
def projector_forward(x, params):
    """x: (N, C_IN) float32. params: PyTorch-layout Linear + BatchNorm parameters."""
    # TODO(synk): training-mode BatchNorm1d (batch statistics) not implemented; eval-mode running
    # stats are folded into the Linears instead.
    w1, b1 = _fold_linear_bn(params["w1"], params["b1"], params["g1"], params["be1"],
                             params["rm1"], params["rv1"])
    w2, b2 = _fold_linear_bn(params["w2"], params["b2"], params["g2"], params["be2"],
                             params["rm2"], params["rv2"])

    n, _ = x.shape
    cout = w2.shape[1]

    vmem_spec = pl.BlockSpec(memory_space=pltpu.MemorySpace.VMEM)
    fn = pl.pallas_call(
        projector_kernel,
        out_shape=jax.ShapeDtypeStruct((n, cout), jnp.float32),
        in_specs=[vmem_spec] * 5,          # whole arrays resident in VMEM, no grid / pipelining
        out_specs=vmem_spec,
    )
    return fn(x, w1, b1, w2, b2)


def reference(x, p):
    """Pure-JAX reference mirroring PyTorch Projector.forward in eval mode."""
    h = x @ p["w1"].T + p["b1"]
    h = (h - p["rm1"]) / jnp.sqrt(p["rv1"] + BN_EPS) * p["g1"] + p["be1"]
    h = h * jax.nn.sigmoid(h)
    y = h @ p["w2"].T + p["b2"]
    y = (y - p["rm2"]) / jnp.sqrt(p["rv2"] + BN_EPS) * p["g2"] + p["be2"]
    return y


if __name__ == "__main__":
    key = jax.random.PRNGKey(0)
    ks = jax.random.split(key, 13)

    # Random parameters standing in for a trained state (the 'eye' init only affects initial
    # values, not forward semantics). BatchNorm running_var kept strictly positive.
    params = {
        "w1": jax.random.normal(ks[0], (C_MID, C_IN), jnp.float32) * 0.1,   # Linear1 (out, in)
        "b1": jax.random.normal(ks[1], (C_MID,), jnp.float32) * 0.1,
        "g1": 1.0 + 0.1 * jax.random.normal(ks[2], (C_MID,), jnp.float32),  # BN1 gamma
        "be1": 0.1 * jax.random.normal(ks[3], (C_MID,), jnp.float32),       # BN1 beta
        "rm1": 0.1 * jax.random.normal(ks[4], (C_MID,), jnp.float32),       # BN1 running_mean
        "rv1": jax.random.uniform(ks[5], (C_MID,), jnp.float32, minval=0.5, maxval=1.5),
        "w2": jax.random.normal(ks[6], (C_OUT, C_MID), jnp.float32) * 0.1,  # Linear2 (out, in)
        "b2": jax.random.normal(ks[7], (C_OUT,), jnp.float32) * 0.1,
        "g2": 1.0 + 0.1 * jax.random.normal(ks[8], (C_OUT,), jnp.float32),
        "be2": 0.1 * jax.random.normal(ks[9], (C_OUT,), jnp.float32),
        "rm2": 0.1 * jax.random.normal(ks[10], (C_OUT,), jnp.float32),
        "rv2": jax.random.uniform(ks[11], (C_OUT,), jnp.float32, minval=0.5, maxval=1.5),
    }
    x = jax.random.normal(ks[12], (N, C_IN), jnp.float32)

    y = projector_forward(x, params)
    jax.block_until_ready(y)

    y_ref = reference(x, params)
    assert y.shape == (N, C_OUT)
    assert jnp.allclose(y, y_ref, atol=1e-4, rtol=1e-4), float(jnp.max(jnp.abs(y - y_ref)))

    print("KERNEL_OK")
</pallas_src>

<mosaic_0001>
module attributes {stable_mosaic.version = 11 : i64} {
  func.func @projector_kernel(%arg0: memref<8x32xf32, #tpu.memory_space<vmem>>, %arg1: memref<32x64xf32, #tpu.memory_space<vmem>>, %arg2: memref<1x64xf32, #tpu.memory_space<vmem>>, %arg3: memref<64x32xf32, #tpu.memory_space<vmem>>, %arg4: memref<1x32xf32, #tpu.memory_space<vmem>>, %arg5: memref<8x32xf32, #tpu.memory_space<vmem>>) attributes {dimension_semantics = [], scalar_prefetch = 0 : i64, scratch_operands = 0 : i64, tpu.core_type = #tpu.core_type<tc>} {
    %c0 = arith.constant 0 : index
    %c0_0 = arith.constant 0 : index
    %0 = vector.load %arg0[%c0, %c0_0] : memref<8x32xf32, #tpu.memory_space<vmem>>, vector<8x32xf32>
    %c0_1 = arith.constant 0 : index
    %c0_2 = arith.constant 0 : index
    %1 = vector.load %arg1[%c0_1, %c0_2] : memref<32x64xf32, #tpu.memory_space<vmem>>, vector<32x64xf32>
    %cst = arith.constant dense<0.000000e+00> : vector<8x64xf32>
    %2 = tpu.matmul %0, %1, %cst {dimension_numbers = #tpu.dot_dimension_numbers<[1], [0], [0], [1], [0, 0, 1, 1], [], []>} : vector<8x32xf32>, vector<32x64xf32>, vector<8x64xf32> -> vector<8x64xf32>
    %c0_3 = arith.constant 0 : index
    %c0_4 = arith.constant 0 : index
    %3 = vector.load %arg2[%c0_3, %c0_4] : memref<1x64xf32, #tpu.memory_space<vmem>>, vector<1x64xf32>
    %4 = vector.broadcast %3 : vector<1x64xf32> to vector<8x64xf32>
    %5 = arith.addf %2, %4 : vector<8x64xf32>
    %6 = arith.negf %5 : vector<8x64xf32>
    %7 = math.exp %6 : vector<8x64xf32>
    %cst_5 = arith.constant 1.000000e+00 : f32
    %8 = vector.broadcast %cst_5 : f32 to vector<8x64xf32>
    %9 = arith.addf %8, %7 : vector<8x64xf32>
    %10 = arith.divf %8, %9 : vector<8x64xf32>
    %11 = arith.mulf %5, %10 : vector<8x64xf32>
    %c0_6 = arith.constant 0 : index
    %c0_7 = arith.constant 0 : index
    %12 = vector.load %arg3[%c0_6, %c0_7] : memref<64x32xf32, #tpu.memory_space<vmem>>, vector<64x32xf32>
    %cst_8 = arith.constant dense<0.000000e+00> : vector<8x32xf32>
    %13 = tpu.matmul %11, %12, %cst_8 {dimension_numbers = #tpu.dot_dimension_numbers<[1], [0], [0], [1], [0, 0, 1, 1], [], []>} : vector<8x64xf32>, vector<64x32xf32>, vector<8x32xf32> -> vector<8x32xf32>
    %c0_9 = arith.constant 0 : index
    %c0_10 = arith.constant 0 : index
    %14 = vector.load %arg4[%c0_9, %c0_10] : memref<1x32xf32, #tpu.memory_space<vmem>>, vector<1x32xf32>
    %15 = vector.broadcast %14 : vector<1x32xf32> to vector<8x32xf32>
    %16 = arith.addf %13, %15 : vector<8x32xf32>
    %c0_11 = arith.constant 0 : index
    %c0_12 = arith.constant 0 : index
    %17 = vector.load %arg5[%c0_11, %c0_12] : memref<8x32xf32, #tpu.memory_space<vmem>>, vector<8x32xf32>
    tpu.vector_store %arg5[%c0_11, %c0_12], %16 {strides = array<i32>} : memref<8x32xf32, #tpu.memory_space<vmem>>, vector<8x32xf32>,
    return
  }
}

</mosaic_0001>

<llo_original>
// kernel: projector_forward.1
$region0: #{projector_forward.1}
  #allocation0 [shape = 'u32[]', space=smem, size = 0x4, offset = 0x4, fixed_abs, tag = 'smem constant byte address 0x4 - core index']
  #allocation1 [shape = 'u32[144,128]{1,0:T(1,128)}', space=vmem, size = 0x12000, scoped, tag = 'internal scratch']
  %s0 = inlined_call_operand.vmem [shape: f32[8,32], index: 0, kind: input, shape index: {}]
  %s1 = inlined_call_operand.vmem [shape: f32[32,64], index: 1, kind: input, shape index: {}]
  %s2 = inlined_call_operand.vmem [shape: f32[1,64], index: 2, kind: input, shape index: {}]
  %s3 = inlined_call_operand.vmem [shape: f32[64,32], index: 3, kind: input, shape index: {}]
  %s4 = inlined_call_operand.vmem [shape: f32[1,32], index: 4, kind: input, shape index: {}]
  %s5 = inlined_call_operand.hbm [shape: f32[8,32], index: 5, kind: output, shape index: {}]
  %s6 = sld [smem:[#allocation0]]
  $region30: #{projector_forward.1} parent=0
    _
  %s8 = ssub.s32 1, %s6
  %s9 = scalar_select 0, %s8, %s6
  $region1: #{projector_forward.1} parent=0
    #allocation2 [shape = 'u8[4096]{0}', space=vmem, size = 0x1000, scoped, tag = 'output window, operand 0, single buffered']
    #allocation3 [shape = 's32[1]{0}', space=sflag, size = 0x4, scoped, tag = 'scoped memory for projector_forward.1']
    %10 = vsyncpa [#allocation3], 0
    // Predicated region
    $region2: #{projector_forward.1} parent=1 // pred_check
      _
    $region3: #{projector_forward.1} parent=1 // pred_check_branch
      %12 = sbr.rel (0) target = $region5
    $region4: #{projector_forward.1} parent=1 // pred_region
      _
    $region5: #{projector_forward.1} parent=1 // pred_fallthru
      _
    // Predicated region
    $region6: #{projector_forward.1} parent=1 // pred_check
      _
    $region7: #{projector_forward.1} parent=1 // pred_check_branch
      %14 = sbr.rel (0) target = $region9
    $region8: #{projector_forward.1} parent=1 // pred_region
      _
    $region9: #{projector_forward.1} parent=1 // pred_fallthru
      _
    // Predicated region
    $region10: #{projector_forward.1} parent=1 // pred_check
      _
    $region11: #{projector_forward.1} parent=1 // pred_check_branch
      %16 = sbr.rel (0) target = $region13
    $region12: #{projector_forward.1} parent=1 // pred_region
      _
    $region13: #{projector_forward.1} parent=1 // pred_fallthru
      _
    // Predicated region
    $region14: #{projector_forward.1} parent=1 // pred_check
      _
    $region15: #{projector_forward.1} parent=1 // pred_check_branch
      %18 = sbr.rel (0) target = $region17
    $region16: #{projector_forward.1} parent=1 // pred_region
      _
    $region17: #{projector_forward.1} parent=1 // pred_fallthru
      _
    // Predicated region
    $region18: #{projector_forward.1} parent=1 // pred_check
      _
    $region19: #{projector_forward.1} parent=1 // pred_check_branch
      %20 = sbr.rel (0) target = $region21
    $region20: #{projector_forward.1} parent=1 // pred_region
      _
    $region21: #{projector_forward.1} parent=1 // pred_fallthru
      _
    %v21 = vld [vmem:[%s0] sm:$0xff]
    %v22 = vld [vmem:[%s1] sm:$0xff]
    %v23 = vld [vmem:[%s1 + $0x8] sm:$0xff]
    %v24 = vld [vmem:[%s1 + $0x10] sm:$0xff]
    %v25 = vld [vmem:[%s1 + $0x18] sm:$0xff]
    %v26 = vld [vmem:[%s2] sm:$0x1]
    %v28 = vlaneseq
    %v29 = vshrl.u32 %v28, 7
    %v30 = vsub.s32 0, %v29
    %v31 = vrot.slane %v26, %v30
    %vm33 = vcmask 261120
    %v35 = vsel %vm33, %v21, 0
    %37 = vmatprep.subr.mxu0 0.0
    %38 = vmatpush1.msra.mxu0 0.0
    %39 = vmatprep.subr.mxu0 0.0
    %40 = vmatpush1.msra.mxu0 0.0
    %41 = vmatprep.subr.mxu0 0.0
    %42 = vmatpush1.msra.mxu0 0.0
    %43 = vmatprep.subr.mxu0 0.0
    %44 = vmatpush1.msra.mxu0 0.0
    %45 = vmatprep.subr.mxu0 0.0
    %46 = vmatpush1.msra.mxu0 0.0
    %47 = vmatprep.subr.mxu0 0.0
    %48 = vmatpush1.msra.mxu0 0.0
    %49 = vmatprep.subr.mxu0 0.0
    %50 = vmatpush1.msra.mxu0 0.0
    %51 = vmatprep.subr.mxu0 0.0
    %52 = vmatpush1.msra.mxu0 0.0
    %53 = vmatprep.subr.mxu0 0.0
    %54 = vmatpush1.msra.mxu0 0.0
    %55 = vmatprep.subr.mxu0 0.0
    %56 = vmatpush1.msra.mxu0 0.0
    %57 = vmatprep.subr.mxu0 0.0
    %58 = vmatpush1.msra.mxu0 0.0
    %59 = vmatprep.subr.mxu0 0.0
    %60 = vmatpush1.msra.mxu0 0.0
    %61 = vmatprep.subr.mxu0 0.0
    %62 = vmatpush1.msra.mxu0 %v25
    %63 = vmatprep.subr.mxu0 0.0
    %64 = vmatpush1.msra.mxu0 %v24
    %65 = vmatprep.subr.mxu0 0.0
    %66 = vmatpush1.msra.mxu0 %v23
    %67 = vmatprep.subr.mxu0 0.0
    %68 = vmatpush1.msra.mxu0 %v22
    %69 = vmatprep.subr.mxu0 0.0
    %70 = vmatpush2.msra.mxu0 0.0
    %71 = vmatprep.subr.mxu0 0.0
    %72 = vmatpush2.msra.mxu0 0.0
    %73 = vmatprep.subr.mxu0 0.0
    %74 = vmatpush2.msra.mxu0 0.0
    %75 = vmatprep.subr.mxu0 0.0
    %76 = vmatpush2.msra.mxu0 0.0
    %77 = vmatprep.subr.mxu0 0.0
    %78 = vmatpush2.msra.mxu0 0.0
    %79 = vmatprep.subr.mxu0 0.0
    %80 = vmatpush2.msra.mxu0 0.0
    %81 = vmatprep.subr.mxu0 0.0
    %82 = vmatpush2.msra.mxu0 0.0
    %83 = vmatprep.subr.mxu0 0.0
    %84 = vmatpush2.msra.mxu0 0.0
    %85 = vmatprep.subr.mxu0 0.0
    %86 = vmatpush2.msra.mxu0 0.0
    %87 = vmatprep.subr.mxu0 0.0
    %88 = vmatpush2.msra.mxu0 0.0
    %89 = vmatprep.subr.mxu0 0.0
    %90 = vmatpush2.msra.mxu0 0.0
    %91 = vmatprep.subr.mxu0 0.0
    %92 = vmatpush2.msra.mxu0 0.0
    %93 = vmatprep.subr.mxu0 0.0
    %94 = vmatpush2.msra.mxu0 0.0
    %95 = vmatprep.subr.mxu0 0.0
    %96 = vmatpush2.msra.mxu0 0.0
    %97 = vmatprep.subr.mxu0 0.0
    %98 = vmatpush2.msra.mxu0 0.0
    %99 = vmatprep.subr.mxu0 0.0
    %100 = vmatpush2.msra.mxu0 0.0
    %101 = vmatprep.mubr.f32.mxu0 0.0
    %102 = vmatmul.mubr.f32.gmra.mxu0 %v35
    %v103 = vpop.f32.mrf.mxu0
    %v104 = vadd.f32 %v31, %v103
    %v105 = vpop.f32.mrf.mxu0
    %106 = vdwg.mxu0
    %v107 = vxor.u32 %v104, 2147483648
    %v108 = vmul.f32 %v107, 1.442695
    %v109 = vpow.pop %v108
    %v110 = vadd.f32 %v109, 1.0
    %v111 = vrcp.pop %v110
    %v112 = vmul.f32 1.0, %v111
    %v113 = vmul.f32 %v104, %v112
    %v114 = vld [vmem:[%s3] sm:$0xff]
    %v115 = vld [vmem:[%s3 + $0x8] sm:$0xff]
    %v116 = vld [vmem:[%s3 + $0x10] sm:$0xff]
    %v117 = vld [vmem:[%s3 + $0x18] sm:$0xff]
    %v118 = vld [vmem:[%s3 + $0x20] sm:$0xff]
    %v119 = vld [vmem:[%s3 + $0x28] sm:$0xff]
    %v120 = vld [vmem:[%s3 + $0x30] sm:$0xff]
    %v121 = vld [vmem:[%s3 + $0x38] sm:$0xff]
    %v122 = vld [vmem:[%s4] sm:$0x1]
    %v124 = vlaneseq
    %v125 = vshrl.u32 %v124, 7
    %v126 = vsub.s32 0, %v125
    %v127 = vrot.slane %v122, %v126
    %vm129 = vcmask 523264
    %v131 = vsel %vm129, %v113, 0
    %133 = vmatprep.subr.mxu0 0.0
    %134 = vmatpush1.msra.mxu0 0.0
    %135 = vmatprep.subr.mxu0 0.0
    %136 = vmatpush1.msra.mxu0 0.0
    %137 = vmatprep.subr.mxu0 0.0
    %138 = vmatpush1.msra.mxu0 0.0
    %139 = vmatprep.subr.mxu0 0.0
    %140 = vmatpush1.msra.mxu0 0.0
    %141 = vmatprep.subr.mxu0 0.0
    %142 = vmatpush1.msra.mxu0 0.0
    %143 = vmatprep.subr.mxu0 0.0
    %144 = vmatpush1.msra.mxu0 0.0
    %145 = vmatprep.subr.mxu0 0.0
    %146 = vmatpush1.msra.mxu0 0.0
    %147 = vmatprep.subr.mxu0 0.0
    %148 = vmatpush1.msra.mxu0 0.0
    %149 = vmatprep.subr.mxu0 0.0
    %150 = vmatpush1.msra.mxu0 %v121
    %151 = vmatprep.subr.mxu0 0.0
    %152 = vmatpush1.msra.mxu0 %v120
    %153 = vmatprep.subr.mxu0 0.0
    %154 = vmatpush1.msra.mxu0 %v119
    %155 = vmatprep.subr.mxu0 0.0
    %156 = vmatpush1.msra.mxu0 %v118
    %157 = vmatprep.subr.mxu0 0.0
    %158 = vmatpush1.msra.mxu0 %v117
    %159 = vmatprep.subr.mxu0 0.0
    %160 = vmatpush1.msra.mxu0 %v116
    %161 = vmatprep.subr.mxu0 0.0
    %162 = vmatpush1.msra.mxu0 %v115
    %163 = vmatprep.subr.mxu0 0.0
    %164 = vmatpush1.msra.mxu0 %v114
    %165 = vmatprep.subr.mxu0 0.0
    %166 = vmatpush2.msra.mxu0 0.0
    %167 = vmatprep.subr.mxu0 0.0
    %168 = vmatpush2.msra.mxu0 0.0
    %169 = vmatprep.subr.mxu0 0.0
    %170 = vmatpush2.msra.mxu0 0.0
    %171 = vmatprep.subr.mxu0 0.0
    %172 = vmatpush2.msra.mxu0 0.0
    %173 = vmatprep.subr.mxu0 0.0
    %174 = vmatpush2.msra.mxu0 0.0
    %175 = vmatprep.subr.mxu0 0.0
    %176 = vmatpush2.msra.mxu0 0.0
    %177 = vmatprep.subr.mxu0 0.0
    %178 = vmatpush2.msra.mxu0 0.0
    %179 = vmatprep.subr.mxu0 0.0
    %180 = vmatpush2.msra.mxu0 0.0
    %181 = vmatprep.subr.mxu0 0.0
    %182 = vmatpush2.msra.mxu0 0.0
    %183 = vmatprep.subr.mxu0 0.0
    %184 = vmatpush2.msra.mxu0 0.0
    %185 = vmatprep.subr.mxu0 0.0
    %186 = vmatpush2.msra.mxu0 0.0
    %187 = vmatprep.subr.mxu0 0.0
    %188 = vmatpush2.msra.mxu0 0.0
    %189 = vmatprep.subr.mxu0 0.0
    %190 = vmatpush2.msra.mxu0 0.0
    %191 = vmatprep.subr.mxu0 0.0
    %192 = vmatpush2.msra.mxu0 0.0
    %193 = vmatprep.subr.mxu0 0.0
    %194 = vmatpush2.msra.mxu0 0.0
    %195 = vmatprep.subr.mxu0 0.0
    %196 = vmatpush2.msra.mxu0 0.0
    %197 = vmatprep.mubr.f32.mxu0 0.0
    %198 = vmatmul.mubr.f32.gmra.mxu0 %v131
    %v199 = vpop.f32.mrf.mxu0
    %v200 = vadd.f32 %v127, %v199
    %v201 = vpop.f32.mrf.mxu0
    %202 = vdwg.mxu0
    %203 = vst.msk [vmem:[#allocation2] sm:$0xff] %vm33, %v200
    // Predicated region
    $region22: #{projector_forward.1} parent=1 // pred_check
      _
    $region23: #{projector_forward.1} parent=1 // pred_check_branch
      %205 = sbr.rel (0) target = $region25
    $region24: #{projector_forward.1} parent=1 // pred_region
      %s207 = ssub.s32 128, 128
      %208 = vsyncadd [#allocation3], %s207
      %s210 = sshll.u32 [#allocation2], 4
      %s211 = int_to_ptr.vmem [resolvable:$true] %s210
      %213 = dma.vmem_to_hbm [thread:$0]  %s211, 128, %s5, [#allocation3]
    $region25: #{projector_forward.1} parent=1 // pred_fallthru
      _
    // Predicated region
    $region26: #{projector_forward.1} parent=1 // pred_check
      _
    $region27: #{projector_forward.1} parent=1 // pred_check_branch
      %215 = sbr.rel (0) target = $region29
    $region28: #{projector_forward.1} parent=1 // pred_region
      %216 = dma.done [#allocation3], 128
    $region29: #{projector_forward.1} parent=1 // pred_fallthru
      _
    %217 = vsyncpa [#allocation3], 1

</llo_original>
